<compile_context>
chip_gen: v5e
topology: v5e:2x2
jax: 0.10.0
libtpu: 0.0.40
codegen_flags: <defaults>
</compile_context>

<pallas_src>
import functools

import jax
import jax.numpy as jnp
from jax.experimental import pallas as pl
from jax.experimental.pallas import tpu as pltpu


def _round_up(x, m):
    return ((x + m - 1) // m) * m


def _nn_complex_kernel(n_layers, half_last, *refs):
    """Fused forward of the packed complex MLP.

    refs = (x_big, [w_big, b_big] * n_layers, out)
      x_big block : (TB, 2*half_in)           -- [xr | xi], halves 64-lane padded
      w_big l     : (2*half_in, 2*half_out)   -- [[Wr, Wi], [-Wi, Wr]]
      b_big l     : (1, 2*half_out)           -- [br | bi]
      out block   : (TB, 2*half_last)         -- |y| in lanes [0:half_last)
    """
    x_ref = refs[0]
    out_ref = refs[-1]
    param_refs = refs[1:-1]

    x = x_ref[...]
    for l in range(n_layers):
        w = param_refs[2 * l][...]
        b = param_refs[2 * l + 1][...]
        # One real matmul on the MXU implements the complex linear layer;
        # a single broadcast add applies both real and imag biases.
        y = jnp.dot(x, w, preferred_element_type=jnp.float32) + b
        if l < n_layers - 1:
            # Complex ReLU == elementwise ReLU on both packed halves at once.
            x = jnp.maximum(y, 0.0)
        else:
            # Swap the real/imag halves with an XLU lane-rotate (free slot);
            # sqrt(y^2 + roll(y)^2) puts |y| in lanes [0:half_last) (padded
            # columns stay exactly 0).  Avoids a non-128-aligned lane slice.
            y_swap = pltpu.roll(y, shift=half_last, axis=1)
            out_ref[...] = jnp.sqrt(y * y + y_swap * y_swap)


def pack_params(params):
    """Pack each ComplexLinear once (call OUTSIDE the forward path and cache).

    Each layer's complex algebra becomes one real (2*hi, 2*ho) weight and a
    (1, 2*ho) bias, where hi/ho are the in/out dims zero-padded to a multiple
    of 64 lanes (so real+imag together fill whole 128-lane groups)."""
    packed = []
    for (wr, wi, br, bi) in params:
        d_in, d_out = wr.shape
        hi = _round_up(d_in, 64)
        ho = _round_up(d_out, 64)
        wr_p = jnp.zeros((hi, ho), jnp.float32).at[:d_in, :d_out].set(wr)
        wi_p = jnp.zeros((hi, ho), jnp.float32).at[:d_in, :d_out].set(wi)
        br_p = jnp.zeros((1, ho), jnp.float32).at[:, :d_out].set(br)
        bi_p = jnp.zeros((1, ho), jnp.float32).at[:, :d_out].set(bi)
        w_big = jnp.concatenate(
            [jnp.concatenate([wr_p, wi_p], axis=1),
             jnp.concatenate([-wi_p, wr_p], axis=1)], axis=0)
        b_big = jnp.concatenate([br_p, bi_p], axis=1)
        packed.append((w_big, b_big))
    return packed


def nn_complex_forward(x_r, x_i, packed):
    """Forward pass.  `packed` is the output of pack_params (built once).
    Returns |final complex output| with shape (B, 1)."""
    n_layers = len(packed)
    B, F = x_r.shape
    half_in = packed[0][0].shape[0] // 2
    half_last = packed[-1][0].shape[1] // 2

    # Row tile: multiple of 8.  For B >= 16 keep >= 2 grid steps so the
    # "parallel" batch axis can shard across v7x's two TensorCores; cap at
    # 512 rows to amortize the ~0.35us per-step overhead for large batches.
    if B <= 8:
        tb = 8
    else:
        tb = min(512, _round_up(pl.cdiv(B, 2), 8))
    b_pad = _round_up(B, tb)

    # Lane-dense packed input [xr | xi] (width 2*half_in), zero-padded rows.
    # TODO(synk): for very large B, pass x_r/x_i straight into the kernel and
    # pack into a VMEM scratch to skip this extra HBM pass over activations.
    x_big = jnp.zeros((b_pad, 2 * half_in), jnp.float32)
    x_big = x_big.at[:B, :F].set(x_r).at[:B, half_in:half_in + F].set(x_i)

    inputs = [x_big]
    in_specs = [pl.BlockSpec((tb, 2 * half_in), lambda i: (i, 0))]
    for (w_big, b_big) in packed:
        inputs += [w_big, b_big]
        # Constant index_map -> weights/biases stay VMEM-resident across the
        # batch grid; no re-DMA per grid step.
        in_specs.append(pl.BlockSpec(w_big.shape, lambda i: (0, 0)))
        in_specs.append(pl.BlockSpec(b_big.shape, lambda i: (0, 0)))
    out_specs = pl.BlockSpec((tb, 2 * half_last), lambda i: (i, 0))

    # Advisory cost estimate so XLA can schedule around this small custom call.
    flops = 0
    bytes_accessed = x_big.size * 4 + b_pad * 2 * half_last * 4
    for (w_big, b_big) in packed:
        k, n = w_big.shape
        flops += 2 * b_pad * k * n
        bytes_accessed += (w_big.size + b_big.size) * 4
    cost = pl.CostEstimate(flops=flops,
                           transcendentals=b_pad * 2 * half_last,
                           bytes_accessed=bytes_accessed)

    kernel = functools.partial(_nn_complex_kernel, n_layers, half_last)

    out_pad = pl.pallas_call(
        kernel,
        out_shape=jax.ShapeDtypeStruct((b_pad, 2 * half_last), jnp.float32),
        grid=(b_pad // tb,),
        in_specs=in_specs,
        out_specs=out_specs,
        compiler_params=pltpu.CompilerParams(
            dimension_semantics=("parallel",)),
        cost_estimate=cost,
    )(*inputs)

    # NN_complex's final ComplexLinear always maps to 1 unit; its magnitude
    # sits in lane 0 of the padded output slab.  Drop batch/lane padding.
    return out_pad[:B, :1]


def init_params(key, n_features, list_hidden):
    """Deterministic init of ComplexLinear weights (PyTorch-style uniform bound)."""
    dims = [n_features] + list_hidden + [1]
    params = []
    for i in range(len(dims) - 1):
        d_in, d_out = dims[i], dims[i + 1]
        key, k1, k2, k3, k4 = jax.random.split(key, 5)
        bound = 1.0 / jnp.sqrt(d_in)
        wr = jax.random.uniform(k1, (d_in, d_out), jnp.float32, -bound, bound)
        wi = jax.random.uniform(k2, (d_in, d_out), jnp.float32, -bound, bound)
        br = jax.random.uniform(k3, (1, d_out), jnp.float32, -bound, bound)
        bi = jax.random.uniform(k4, (1, d_out), jnp.float32, -bound, bound)
        params.append((wr, wi, br, bi))
    return params


def reference_forward(x_r, x_i, params):
    """Plain-JAX reference using complex64 (mirrors the PyTorch graph)."""
    x = x_r.astype(jnp.complex64) + 1j * x_i.astype(jnp.complex64)
    n_layers = len(params)
    for l, (wr, wi, br, bi) in enumerate(params):
        w = wr + 1j * wi
        b = br + 1j * bi
        x = x @ w + b
        if l < n_layers - 1:
            # complex ReLU
            x = jnp.maximum(x.real, 0.0) + 1j * jnp.maximum(x.imag, 0.0)
    return jnp.abs(x)


if __name__ == "__main__":
    # Shapes consistent with the module: batch=8, n_features=32,
    # list_hidden=[32, 32] -> ComplexLinear(32,32), act, ComplexLinear(32,32),
    # act, ComplexLinear(32,1), abs.
    batch = 8
    n_features = 32
    list_hidden = [32, 32]

    key = jax.random.PRNGKey(0)
    key, kx_r, kx_i = jax.random.split(key, 3)
    x_r = jax.random.normal(kx_r, (batch, n_features), jnp.float32)
    x_i = jax.random.normal(kx_i, (batch, n_features), jnp.float32)

    params = init_params(key, n_features, list_hidden)

    # Pack once (weight-change-time work), jit the hot forward path.
    packed = pack_params(params)
    packed = jax.block_until_ready(packed)
    fwd = jax.jit(nn_complex_forward)

    out = fwd(x_r, x_i, packed)
    out = jax.block_until_ready(out)

    ref = reference_forward(x_r, x_i, params)
    assert out.shape == (batch, 1), out.shape
    assert jnp.allclose(out, ref, atol=1e-4, rtol=1e-4), (out, ref)

    # TODO(synk): ComplexDropout / ComplexBatchNorm1d paths (use_dropout/use_bn)
    # are disabled by default in the module and are not implemented here.
    print("KERNEL_OK")
</pallas_src>

<mosaic_0001>
module attributes {stable_mosaic.version = 11 : i64} {
  func.func @_nn_complex_kernel(%arg0: i32, %arg1: memref<8x128xf32, #tpu.memory_space<vmem>>, %arg2: memref<128x128xf32, #tpu.memory_space<vmem>>, %arg3: memref<1x128xf32, #tpu.memory_space<vmem>>, %arg4: memref<128x128xf32, #tpu.memory_space<vmem>>, %arg5: memref<1x128xf32, #tpu.memory_space<vmem>>, %arg6: memref<128x128xf32, #tpu.memory_space<vmem>>, %arg7: memref<1x128xf32, #tpu.memory_space<vmem>>, %arg8: memref<8x128xf32, #tpu.memory_space<vmem>>) attributes {dimension_semantics = [#tpu.dimension_semantics<parallel>], iteration_bounds = array<i64: 1>, scalar_prefetch = 0 : i64, scratch_operands = 0 : i64, tpu.core_type = #tpu.core_type<tc>, window_params = [{transform_indices = @transform_0, window_bounds = array<i64: 8, 128>}, {pipeline_mode = #tpu.pipeline_mode<synchronous>, transform_indices = @transform_1, window_bounds = array<i64: 128, 128>}, {pipeline_mode = #tpu.pipeline_mode<synchronous>, transform_indices = @transform_2, window_bounds = array<i64: 1, 128>}, {pipeline_mode = #tpu.pipeline_mode<synchronous>, transform_indices = @transform_3, window_bounds = array<i64: 128, 128>}, {pipeline_mode = #tpu.pipeline_mode<synchronous>, transform_indices = @transform_4, window_bounds = array<i64: 1, 128>}, {pipeline_mode = #tpu.pipeline_mode<synchronous>, transform_indices = @transform_5, window_bounds = array<i64: 128, 128>}, {pipeline_mode = #tpu.pipeline_mode<synchronous>, transform_indices = @transform_6, window_bounds = array<i64: 1, 128>}, {transform_indices = @transform_7, window_bounds = array<i64: 8, 128>}]} {
    %c0 = arith.constant 0 : index
    %c0_0 = arith.constant 0 : index
    %0 = vector.load %arg1[%c0, %c0_0] : memref<8x128xf32, #tpu.memory_space<vmem>>, vector<8x128xf32>
    %c0_1 = arith.constant 0 : index
    %c0_2 = arith.constant 0 : index
    %1 = vector.load %arg2[%c0_1, %c0_2] : memref<128x128xf32, #tpu.memory_space<vmem>>, vector<128x128xf32>
    %c0_3 = arith.constant 0 : index
    %c0_4 = arith.constant 0 : index
    %2 = vector.load %arg3[%c0_3, %c0_4] : memref<1x128xf32, #tpu.memory_space<vmem>>, vector<1x128xf32>
    %cst = arith.constant dense<0.000000e+00> : vector<8x128xf32>
    %3 = tpu.matmul %0, %1, %cst {dimension_numbers = #tpu.dot_dimension_numbers<[1], [0], [0], [1], [0, 0, 1, 1], [], []>} : vector<8x128xf32>, vector<128x128xf32>, vector<8x128xf32> -> vector<8x128xf32>
    %4 = vector.broadcast %2 : vector<1x128xf32> to vector<8x128xf32>
    %5 = arith.addf %3, %4 : vector<8x128xf32>
    %cst_5 = arith.constant 0.000000e+00 : f32
    %6 = vector.broadcast %cst_5 : f32 to vector<8x128xf32>
    %7 = arith.maximumf %5, %6 : vector<8x128xf32>
    %c0_6 = arith.constant 0 : index
    %c0_7 = arith.constant 0 : index
    %8 = vector.load %arg4[%c0_6, %c0_7] : memref<128x128xf32, #tpu.memory_space<vmem>>, vector<128x128xf32>
    %c0_8 = arith.constant 0 : index
    %c0_9 = arith.constant 0 : index
    %9 = vector.load %arg5[%c0_8, %c0_9] : memref<1x128xf32, #tpu.memory_space<vmem>>, vector<1x128xf32>
    %cst_10 = arith.constant dense<0.000000e+00> : vector<8x128xf32>
    %10 = tpu.matmul %7, %8, %cst_10 {dimension_numbers = #tpu.dot_dimension_numbers<[1], [0], [0], [1], [0, 0, 1, 1], [], []>} : vector<8x128xf32>, vector<128x128xf32>, vector<8x128xf32> -> vector<8x128xf32>
    %11 = vector.broadcast %9 : vector<1x128xf32> to vector<8x128xf32>
    %12 = arith.addf %10, %11 : vector<8x128xf32>
    %cst_11 = arith.constant 0.000000e+00 : f32
    %13 = vector.broadcast %cst_11 : f32 to vector<8x128xf32>
    %14 = arith.maximumf %12, %13 : vector<8x128xf32>
    %c0_12 = arith.constant 0 : index
    %c0_13 = arith.constant 0 : index
    %15 = vector.load %arg6[%c0_12, %c0_13] : memref<128x128xf32, #tpu.memory_space<vmem>>, vector<128x128xf32>
    %c0_14 = arith.constant 0 : index
    %c0_15 = arith.constant 0 : index
    %16 = vector.load %arg7[%c0_14, %c0_15] : memref<1x128xf32, #tpu.memory_space<vmem>>, vector<1x128xf32>
    %cst_16 = arith.constant dense<0.000000e+00> : vector<8x128xf32>
    %17 = tpu.matmul %14, %15, %cst_16 {dimension_numbers = #tpu.dot_dimension_numbers<[1], [0], [0], [1], [0, 0, 1, 1], [], []>} : vector<8x128xf32>, vector<128x128xf32>, vector<8x128xf32> -> vector<8x128xf32>
    %18 = vector.broadcast %16 : vector<1x128xf32> to vector<8x128xf32>
    %19 = arith.addf %17, %18 : vector<8x128xf32>
    %c64_i32 = arith.constant 64 : i32
    %20 = tpu.dynamic_rotate %19 by %c64_i32 dim 1 : vector<8x128xf32>, i32 -> vector<8x128xf32>
    %21 = arith.mulf %19, %19 : vector<8x128xf32>
    %22 = arith.mulf %20, %20 : vector<8x128xf32>
    %23 = arith.addf %21, %22 : vector<8x128xf32>
    %24 = math.sqrt %23 : vector<8x128xf32>
    %c0_17 = arith.constant 0 : index
    %c0_18 = arith.constant 0 : index
    %25 = vector.load %arg8[%c0_17, %c0_18] : memref<8x128xf32, #tpu.memory_space<vmem>>, vector<8x128xf32>
    tpu.vector_store %arg8[%c0_17, %c0_18], %24 {strides = array<i32>} : memref<8x128xf32, #tpu.memory_space<vmem>>, vector<8x128xf32>,
    return
  }
  func.func @transform_0(%arg0: i32) -> (i32, i32) {
    %c0_i32 = arith.constant 0 : i32
    %c0_i32_0 = arith.constant 0 : i32
    return %arg0, %c0_i32 : i32, i32
  }
  func.func @transform_1(%arg0: i32) -> (i32, i32) {
    %c0_i32 = arith.constant 0 : i32
    %c0_i32_0 = arith.constant 0 : i32
    %c0_i32_1 = arith.constant 0 : i32
    return %c0_i32, %c0_i32_0 : i32, i32
  }
  func.func @transform_2(%arg0: i32) -> (i32, i32) {
    %c0_i32 = arith.constant 0 : i32
    %c0_i32_0 = arith.constant 0 : i32
    %c0_i32_1 = arith.constant 0 : i32
    return %c0_i32, %c0_i32_0 : i32, i32
  }
  func.func @transform_3(%arg0: i32) -> (i32, i32) {
    %c0_i32 = arith.constant 0 : i32
    %c0_i32_0 = arith.constant 0 : i32
    %c0_i32_1 = arith.constant 0 : i32
    return %c0_i32, %c0_i32_0 : i32, i32
  }
  func.func @transform_4(%arg0: i32) -> (i32, i32) {
    %c0_i32 = arith.constant 0 : i32
    %c0_i32_0 = arith.constant 0 : i32
    %c0_i32_1 = arith.constant 0 : i32
    return %c0_i32, %c0_i32_0 : i32, i32
  }
  func.func @transform_5(%arg0: i32) -> (i32, i32) {
    %c0_i32 = arith.constant 0 : i32
    %c0_i32_0 = arith.constant 0 : i32
    %c0_i32_1 = arith.constant 0 : i32
    return %c0_i32, %c0_i32_0 : i32, i32
  }
  func.func @transform_6(%arg0: i32) -> (i32, i32) {
    %c0_i32 = arith.constant 0 : i32
    %c0_i32_0 = arith.constant 0 : i32
    %c0_i32_1 = arith.constant 0 : i32
    return %c0_i32, %c0_i32_0 : i32, i32
  }
  func.func @transform_7(%arg0: i32) -> (i32, i32) {
    %c0_i32 = arith.constant 0 : i32
    %c0_i32_0 = arith.constant 0 : i32
    return %arg0, %c0_i32 : i32, i32
  }
}

</mosaic_0001>

<llo_original>
// kernel: nn_complex_forward.1
$region0: #{nn_complex_forward.1}
  #allocation0 [shape = 'u32[]', space=smem, size = 0x4, offset = 0x4, fixed_abs, tag = 'smem constant byte address 0x4 - core index']
  #allocation1 [shape = 'u32[72,128]{1,0:T(1,128)}', space=vmem, size = 0x9000, scoped, tag = 'internal scratch']
  %s0 = inlined_call_operand.vmem [shape: f32[8,128], index: 0, kind: input, shape index: {}]
  %s1 = inlined_call_operand.hbm [shape: f32[128,128], index: 1, kind: input, shape index: {}]
  %s2 = inlined_call_operand.vmem [shape: f32[1,128], index: 2, kind: input, shape index: {}]
  %s3 = inlined_call_operand.hbm [shape: f32[128,128], index: 3, kind: input, shape index: {}]
  %s4 = inlined_call_operand.vmem [shape: f32[1,128], index: 4, kind: input, shape index: {}]
  %s5 = inlined_call_operand.hbm [shape: f32[128,128], index: 5, kind: input, shape index: {}]
  %s6 = inlined_call_operand.vmem [shape: f32[1,128], index: 6, kind: input, shape index: {}]
  %s7 = inlined_call_operand.vmem [shape: f32[8,128], index: 7, kind: output, shape index: {}]
  %s8 = sld [smem:[#allocation0]]
  $region50: #{nn_complex_forward.1} parent=0
    _
  %s10 = ssub.s32 1, %s8
  %s11 = scalar_select 0, %s10, %s8
  $region1: #{nn_complex_forward.1} parent=0
    #allocation2 [shape = 'u8[65536]{0}', space=vmem, size = 0x10000, scoped, tag = 'input window, operand 1, single buffered']
    #allocation3 [shape = 's32[1]{0}', space=sflag, size = 0x4, scoped, tag = 'scoped memory for nn_complex_forward.1']
    #allocation4 [shape = 'u8[65536]{0}', space=vmem, size = 0x10000, scoped, tag = 'input window, operand 3, single buffered']
    #allocation5 [shape = 's32[1]{0}', space=sflag, size = 0x4, scoped, tag = 'scoped memory for nn_complex_forward.1']
    #allocation6 [shape = 'u8[65536]{0}', space=vmem, size = 0x10000, scoped, tag = 'input window, operand 5, single buffered']
    %12 = vsyncpa [#allocation3], 0
    %13 = vsyncpa [#allocation5], 0
    // Predicated region
    $region2: #{nn_complex_forward.1} parent=1 // pred_check
      _
    $region3: #{nn_complex_forward.1} parent=1 // pred_check_branch
      %15 = sbr.rel (0) target = $region5
    $region4: #{nn_complex_forward.1} parent=1 // pred_region
      _
    $region5: #{nn_complex_forward.1} parent=1 // pred_fallthru
      _
    // Predicated region
    $region6: #{nn_complex_forward.1} parent=1 // pred_check
      _
    $region7: #{nn_complex_forward.1} parent=1 // pred_check_branch
      %17 = sbr.rel (0) target = $region9
    $region8: #{nn_complex_forward.1} parent=1 // pred_region
      %19 = vsyncadd [#allocation3], 0
      %s20 = sshll.u32 %s1, 4
      %s21 = int_to_ptr.hbm [resolvable:$true] %s20
      %s22 = sshll.u32 [#allocation2], 4
      %s23 = int_to_ptr.vmem [resolvable:$true] %s22
      %28 = dma.hbm_to_vmem [thread:$0]  %s21, 2048, %s23, [#allocation3], 128, 128, 8
    $region9: #{nn_complex_forward.1} parent=1 // pred_fallthru
      _
    // Predicated region
    $region10: #{nn_complex_forward.1} parent=1 // pred_check
      _
    $region11: #{nn_complex_forward.1} parent=1 // pred_check_branch
      %30 = sbr.rel (0) target = $region13
    $region12: #{nn_complex_forward.1} parent=1 // pred_region
      _
    $region13: #{nn_complex_forward.1} parent=1 // pred_fallthru
      _
    // Predicated region
    $region14: #{nn_complex_forward.1} parent=1 // pred_check
      _
    $region15: #{nn_complex_forward.1} parent=1 // pred_check_branch
      %32 = sbr.rel (0) target = $region17
    $region16: #{nn_complex_forward.1} parent=1 // pred_region
      %34 = vsyncadd [#allocation5], 0
      %s35 = sshll.u32 %s3, 4
      %s36 = int_to_ptr.hbm [resolvable:$true] %s35
      %s37 = sshll.u32 [#allocation4], 4
      %s38 = int_to_ptr.vmem [resolvable:$true] %s37
      %43 = dma.hbm_to_vmem [thread:$0]  %s36, 2048, %s38, [#allocation5], 128, 128, 8
    $region17: #{nn_complex_forward.1} parent=1 // pred_fallthru
      _
    // Predicated region
    $region18: #{nn_complex_forward.1} parent=1 // pred_check
      _
    $region19: #{nn_complex_forward.1} parent=1 // pred_check_branch
      %45 = sbr.rel (0) target = $region21
    $region20: #{nn_complex_forward.1} parent=1 // pred_region
      _
    $region21: #{nn_complex_forward.1} parent=1 // pred_fallthru
      _
    // Predicated region
    $region22: #{nn_complex_forward.1} parent=1 // pred_check
      _
    $region23: #{nn_complex_forward.1} parent=1 // pred_check_branch
      %47 = sbr.rel (0) target = $region25
    $region24: #{nn_complex_forward.1} parent=1 // pred_region
      %49 = vsyncadd [#allocation5], 0
      %s50 = sshll.u32 %s5, 4
      %s51 = int_to_ptr.hbm [resolvable:$true] %s50
      %s52 = sshll.u32 [#allocation6], 4
      %s53 = int_to_ptr.vmem [resolvable:$true] %s52
      %58 = dma.hbm_to_vmem [thread:$0]  %s51, 2048, %s53, [#allocation5], 128, 128, 8
    $region25: #{nn_complex_forward.1} parent=1 // pred_fallthru
      _
    // Predicated region
    $region26: #{nn_complex_forward.1} parent=1 // pred_check
      _
    $region27: #{nn_complex_forward.1} parent=1 // pred_check_branch
      %60 = sbr.rel (0) target = $region29
    $region28: #{nn_complex_forward.1} parent=1 // pred_region
      _
    $region29: #{nn_complex_forward.1} parent=1 // pred_fallthru
      _
    // Predicated region
    $region30: #{nn_complex_forward.1} parent=1 // pred_check
      _
    $region31: #{nn_complex_forward.1} parent=1 // pred_check_branch
      %62 = sbr.rel (0) target = $region33
    $region32: #{nn_complex_forward.1} parent=1 // pred_region
      %64 = dma.done [#allocation3], 2048
    $region33: #{nn_complex_forward.1} parent=1 // pred_fallthru
      _
    // Predicated region
    $region34: #{nn_complex_forward.1} parent=1 // pred_check
      _
    $region35: #{nn_complex_forward.1} parent=1 // pred_check_branch
      %66 = sbr.rel (0) target = $region37
    $region36: #{nn_complex_forward.1} parent=1 // pred_region
      %68 = dma.done [#allocation5], 2048
    $region37: #{nn_complex_forward.1} parent=1 // pred_fallthru
      _
    // Predicated region
    $region38: #{nn_complex_forward.1} parent=1 // pred_check
      _
    $region39: #{nn_complex_forward.1} parent=1 // pred_check_branch
      %70 = sbr.rel (0) target = $region41
    $region40: #{nn_complex_forward.1} parent=1 // pred_region
      %72 = dma.done [#allocation5], 2048
    $region41: #{nn_complex_forward.1} parent=1 // pred_fallthru
      _
    %v73 = vld [vmem:[%s0] sm:$0xff]
    %v74 = vld [vmem:[#allocation2] sm:$0xff]
    %v75 = vld [vmem:[#allocation2 + $0x8] sm:$0xff]
    %v76 = vld [vmem:[#allocation2 + $0x10] sm:$0xff]
    %v77 = vld [vmem:[#allocation2 + $0x18] sm:$0xff]
    %v78 = vld [vmem:[#allocation2 + $0x20] sm:$0xff]
    %v79 = vld [vmem:[#allocation2 + $0x28] sm:$0xff]
    %v80 = vld [vmem:[#allocation2 + $0x30] sm:$0xff]
    %v81 = vld [vmem:[#allocation2 + $0x38] sm:$0xff]
    %v82 = vld [vmem:[#allocation2 + $0x40] sm:$0xff]
    %v83 = vld [vmem:[#allocation2 + $0x48] sm:$0xff]
    %v84 = vld [vmem:[#allocation2 + $0x50] sm:$0xff]
    %v85 = vld [vmem:[#allocation2 + $0x58] sm:$0xff]
    %v86 = vld [vmem:[#allocation2 + $0x60] sm:$0xff]
    %v87 = vld [vmem:[#allocation2 + $0x68] sm:$0xff]
    %v88 = vld [vmem:[#allocation2 + $0x70] sm:$0xff]
    %v89 = vld [vmem:[#allocation2 + $0x78] sm:$0xff]
    %v90 = vld [vmem:[%s2] sm:$0x1]
    %v92 = vperm.slane %v90, 0
    %94 = vmatpush.msra.mxu0 %v89
    %95 = vmatpush.msra.mxu0 %v88
    %96 = vmatpush.msra.mxu0 %v87
    %97 = vmatpush.msra.mxu0 %v86
    %98 = vmatpush.msra.mxu0 %v85
    %99 = vmatpush.msra.mxu0 %v84
    %100 = vmatpush.msra.mxu0 %v83
    %101 = vmatpush.msra.mxu0 %v82
    %102 = vmatpush.msra.mxu0 %v81
    %103 = vmatpush.msra.mxu0 %v80
    %104 = vmatpush.msra.mxu0 %v79
    %105 = vmatpush.msra.mxu0 %v78
    %106 = vmatpush.msra.mxu0 %v77
    %107 = vmatpush.msra.mxu0 %v76
    %108 = vmatpush.msra.mxu0 %v75
    %109 = vmatpush.msra.mxu0 %v74
    %110 = vmatmul.f32.gmra.mxu0 %v73
    %v111 = vpop.f32.mrf.mxu0
    %v112 = vadd.f32 %v92, %v111
    %113 = vdwg.mxu0
    %v114 = vmax.f32 %v112, 0.0
    %v115 = vld [vmem:[#allocation4] sm:$0xff]
    %v116 = vld [vmem:[#allocation4 + $0x8] sm:$0xff]
    %v117 = vld [vmem:[#allocation4 + $0x10] sm:$0xff]
    %v118 = vld [vmem:[#allocation4 + $0x18] sm:$0xff]
    %v119 = vld [vmem:[#allocation4 + $0x20] sm:$0xff]
    %v120 = vld [vmem:[#allocation4 + $0x28] sm:$0xff]
    %v121 = vld [vmem:[#allocation4 + $0x30] sm:$0xff]
    %v122 = vld [vmem:[#allocation4 + $0x38] sm:$0xff]
    %v123 = vld [vmem:[#allocation4 + $0x40] sm:$0xff]
    %v124 = vld [vmem:[#allocation4 + $0x48] sm:$0xff]
    %v125 = vld [vmem:[#allocation4 + $0x50] sm:$0xff]
    %v126 = vld [vmem:[#allocation4 + $0x58] sm:$0xff]
    %v127 = vld [vmem:[#allocation4 + $0x60] sm:$0xff]
    %v128 = vld [vmem:[#allocation4 + $0x68] sm:$0xff]
    %v129 = vld [vmem:[#allocation4 + $0x70] sm:$0xff]
    %v130 = vld [vmem:[#allocation4 + $0x78] sm:$0xff]
    %v131 = vld [vmem:[%s4] sm:$0x1]
    %v133 = vperm.slane %v131, 0
    %135 = vmatpush.msra.mxu0 %v130
    %136 = vmatpush.msra.mxu0 %v129
    %137 = vmatpush.msra.mxu0 %v128
    %138 = vmatpush.msra.mxu0 %v127
    %139 = vmatpush.msra.mxu0 %v126
    %140 = vmatpush.msra.mxu0 %v125
    %141 = vmatpush.msra.mxu0 %v124
    %142 = vmatpush.msra.mxu0 %v123
    %143 = vmatpush.msra.mxu0 %v122
    %144 = vmatpush.msra.mxu0 %v121
    %145 = vmatpush.msra.mxu0 %v120
    %146 = vmatpush.msra.mxu0 %v119
    %147 = vmatpush.msra.mxu0 %v118
    %148 = vmatpush.msra.mxu0 %v117
    %149 = vmatpush.msra.mxu0 %v116
    %150 = vmatpush.msra.mxu0 %v115
    %151 = vmatmul.f32.gmra.mxu0 %v114
    %v152 = vpop.f32.mrf.mxu0
    %v153 = vadd.f32 %v133, %v152
    %154 = vdwg.mxu0
    %v155 = vmax.f32 %v153, 0.0
    %v156 = vld [vmem:[#allocation6] sm:$0xff]
    %v157 = vld [vmem:[#allocation6 + $0x8] sm:$0xff]
    %v158 = vld [vmem:[#allocation6 + $0x10] sm:$0xff]
    %v159 = vld [vmem:[#allocation6 + $0x18] sm:$0xff]
    %v160 = vld [vmem:[#allocation6 + $0x20] sm:$0xff]
    %v161 = vld [vmem:[#allocation6 + $0x28] sm:$0xff]
    %v162 = vld [vmem:[#allocation6 + $0x30] sm:$0xff]
    %v163 = vld [vmem:[#allocation6 + $0x38] sm:$0xff]
    %v164 = vld [vmem:[#allocation6 + $0x40] sm:$0xff]
    %v165 = vld [vmem:[#allocation6 + $0x48] sm:$0xff]
    %v166 = vld [vmem:[#allocation6 + $0x50] sm:$0xff]
    %v167 = vld [vmem:[#allocation6 + $0x58] sm:$0xff]
    %v168 = vld [vmem:[#allocation6 + $0x60] sm:$0xff]
    %v169 = vld [vmem:[#allocation6 + $0x68] sm:$0xff]
    %v170 = vld [vmem:[#allocation6 + $0x70] sm:$0xff]
    %v171 = vld [vmem:[#allocation6 + $0x78] sm:$0xff]
    %v172 = vld [vmem:[%s6] sm:$0x1]
    %v174 = vperm.slane %v172, 0
    %176 = vmatpush.msra.mxu0 %v171
    %177 = vmatpush.msra.mxu0 %v170
    %178 = vmatpush.msra.mxu0 %v169
    %179 = vmatpush.msra.mxu0 %v168
    %180 = vmatpush.msra.mxu0 %v167
    %181 = vmatpush.msra.mxu0 %v166
    %182 = vmatpush.msra.mxu0 %v165
    %183 = vmatpush.msra.mxu0 %v164
    %184 = vmatpush.msra.mxu0 %v163
    %185 = vmatpush.msra.mxu0 %v162
    %186 = vmatpush.msra.mxu0 %v161
    %187 = vmatpush.msra.mxu0 %v160
    %188 = vmatpush.msra.mxu0 %v159
    %189 = vmatpush.msra.mxu0 %v158
    %190 = vmatpush.msra.mxu0 %v157
    %191 = vmatpush.msra.mxu0 %v156
    %192 = vmatmul.f32.gmra.mxu0 %v155
    %v193 = vpop.f32.mrf.mxu0
    %v194 = vadd.f32 %v174, %v193
    %195 = vdwg.mxu0
    %196 = vrot.lane.b32.xlu0 %v194, 64
    %v197 = vpop.permute.xlu0 %196
    %v198 = vmul.f32 %v194, %v194
    %v199 = vmul.f32 %v197, %v197
    %v200 = vadd.f32 %v198, %v199
    %v201 = vrsqrt.pop %v200
    %v202 = vmul.f32 %v201, %v200
    %v203 = vmul.f32 %v202, %v201
    %v204 = vmul.f32 0.5, %v203
    %v205 = vsub.f32 1.5, %v204
    %v206 = vmul.f32 %v201, %v205
    %v207 = vmul.f32 %v200, %v206
    %vm208 = vcmp.eq.f32.partialorder %v200, inf
    %v209 = vsel %vm208, %v200, %v207
    %vm210 = vcmp.eq.f32.partialorder %v200, 0.0
    %v211 = vand.u32 %v200, 2147483648
    %v212 = vsel %vm210, %v211, %v209
    %213 = vst [vmem:[%s7] sm:$0xff] %v212
    // Predicated region
    $region42: #{nn_complex_forward.1} parent=1 // pred_check
      _
    $region43: #{nn_complex_forward.1} parent=1 // pred_check_branch
      %215 = sbr.rel (0) target = $region45
    $region44: #{nn_complex_forward.1} parent=1 // pred_region
      _
    $region45: #{nn_complex_forward.1} parent=1 // pred_fallthru
      _
    // Predicated region
    $region46: #{nn_complex_forward.1} parent=1 // pred_check
      _
    $region47: #{nn_complex_forward.1} parent=1 // pred_check_branch
      %217 = sbr.rel (0) target = $region49
    $region48: #{nn_complex_forward.1} parent=1 // pred_region
      _
    $region49: #{nn_complex_forward.1} parent=1 // pred_fallthru
      _
    %218 = vsyncpa [#allocation3], 1
    %219 = vsyncpa [#allocation5], 1

</llo_original>
